<compile_context>
chip_gen: v7x
topology: tpu7x:2x2x1
jax: 0.10.0
libtpu: 0.0.40
codegen_flags: <defaults>
</compile_context>

<pallas_src>
import jax
import jax.numpy as jnp
from jax.experimental import pallas as pl
from jax.experimental.pallas import tpu as pltpu


def _identity_kernel(x_ref, o_ref):
    # Whole forward pass is y = x: one full-tile VMEM copy per grid step.
    o_ref[...] = x_ref[...]


def _sublane_multiple(dtype) -> int:
    # Native sublane packing: 8 rows for 32-bit, 16 for bf16/f16, 32 for int8/fp8.
    itemsize = jnp.dtype(dtype).itemsize
    return 8 * max(4 // max(itemsize, 1), 1)


def _identity_copy(x):
    """Materialize y = x via a lane-dense, tiled, double-buffered Pallas copy."""
    total = x.size
    dtype = x.dtype
    orig_shape = x.shape
    itemsize = jnp.dtype(dtype).itemsize

    # --- lane-dense last dim: largest multiple of 128 dividing the element count.
    lane = None
    for cand in (2048, 1024, 512, 256, 128):
        if total % cand == 0:
            lane = cand
            break
    if lane is None:
        # Ragged size: pad + copy + slice would be ~3x full-tensor HBM traffic
        # for an op whose ideal cost is zero — just return the input.
        return x

    rows = total // lane
    sub = _sublane_multiple(dtype)

    # --- block sizing: ~4 MiB per buffer.
    # Amortizes the ~0.35 us/step pipeline overhead on v6e/v7x while staying in
    # the v5e sweet spot.  Peak VMEM = 2 arrays x 2 buffers x block ~= 16 MiB,
    # comfortably under the explicit 48 MiB limit set below (and under v7x's
    # 64 MiB physical VMEM).
    target_block_bytes = 4 * 1024 * 1024
    bytes_per_row = lane * itemsize
    tile_rows = max(sub, target_block_bytes // bytes_per_row)
    tile_rows -= tile_rows % sub
    tile_rows = max(tile_rows, sub)

    if rows <= tile_rows:
        # Full-extent rows block: no (8,128) divisibility requirement applies.
        tile_rows = rows
        grid = (1,)
    else:
        # Keep >= 4 grid steps so both v7x TensorCores get work and the
        # double-buffered pipeline actually overlaps prefetch/writeback.
        while rows / tile_rows < 4 and tile_rows > sub:
            half = tile_rows // 2
            tile_rows = max(sub, half - (half % sub))
        grid = (pl.cdiv(rows, tile_rows),)

    x2d = x.reshape(rows, lane)

    out2d = pl.pallas_call(
        _identity_kernel,
        out_shape=jax.ShapeDtypeStruct((rows, lane), dtype),
        grid=grid,
        in_specs=[pl.BlockSpec((tile_rows, lane), lambda i: (i, 0))],
        out_specs=pl.BlockSpec((tile_rows, lane), lambda i: (i, 0)),
        cost_estimate=pl.CostEstimate(
            flops=0,
            transcendentals=0,
            bytes_accessed=2 * total * itemsize,
        ),
        compiler_params=pltpu.CompilerParams(
            dimension_semantics=("parallel",),   # shard rows across TCs (v7x megacore)
            vmem_limit_bytes=48 * 1024 * 1024,   # explicit headroom for 4 MiB blocks
        ),
    )(x2d)

    return out2d.reshape(orig_shape)


def identity(x, *, force_copy=False):
    """Identity.forward(x) == x.

    Default path: return x directly — no kernel, no HBM traffic, no launch
    overhead.  (input_output_aliases does NOT elide a src==dst copy, so the
    only free identity is no kernel at all.)

    force_copy=True: run the Pallas copy kernel to produce a distinct output
    buffer; only useful when a fresh buffer is explicitly required.
    """
    if not force_copy:
        return x
    return _identity_copy(x)


if __name__ == "__main__":
    key = jax.random.PRNGKey(0)
    # Small NCHW input consistent with a conv-style module: batch=2, channels=4, 16x16 spatial.
    x = jax.random.normal(key, (2, 4, 16, 16), dtype=jnp.float32)

    # Default (optimal) path: pure pass-through.
    y = identity(x)
    assert y.shape == x.shape and y.dtype == x.dtype
    assert y is x  # true zero-cost identity

    # Kernel path: exercise the Pallas copy to validate it compiles and runs.
    y_copy = identity(x, force_copy=True)
    jax.block_until_ready(y_copy)
    assert y_copy.shape == x.shape
    assert y_copy.dtype == x.dtype
    assert bool(jnp.all(y_copy == x))

    print("KERNEL_OK")
</pallas_src>

<mosaic_0001>
module attributes {stable_mosaic.version = 11 : i64} {
  func.func @_identity_kernel(%arg0: i32, %arg1: memref<1x2048xf32, #tpu.memory_space<vmem>>, %arg2: memref<1x2048xf32, #tpu.memory_space<vmem>>) attributes {dimension_semantics = [#tpu.dimension_semantics<parallel>], iteration_bounds = array<i64: 1>, scalar_prefetch = 0 : i64, scratch_operands = 0 : i64, tpu.core_type = #tpu.core_type<tc>, window_params = [{transform_indices = @transform_0, window_bounds = array<i64: 1, 2048>}, {transform_indices = @transform_1, window_bounds = array<i64: 1, 2048>}]} {
    %c0 = arith.constant 0 : index
    %c0_0 = arith.constant 0 : index
    %0 = vector.load %arg1[%c0, %c0_0] : memref<1x2048xf32, #tpu.memory_space<vmem>>, vector<1x2048xf32>
    %c0_1 = arith.constant 0 : index
    %c0_2 = arith.constant 0 : index
    %1 = vector.load %arg2[%c0_1, %c0_2] : memref<1x2048xf32, #tpu.memory_space<vmem>>, vector<1x2048xf32>
    tpu.vector_store %arg2[%c0_1, %c0_2], %0 {strides = array<i32>} : memref<1x2048xf32, #tpu.memory_space<vmem>>, vector<1x2048xf32>,
    return
  }
  func.func @transform_0(%arg0: i32) -> (i32, i32) {
    %c0_i32 = arith.constant 0 : i32
    %c0_i32_0 = arith.constant 0 : i32
    return %arg0, %c0_i32 : i32, i32
  }
  func.func @transform_1(%arg0: i32) -> (i32, i32) {
    %c0_i32 = arith.constant 0 : i32
    %c0_i32_0 = arith.constant 0 : i32
    return %arg0, %c0_i32 : i32, i32
  }
}

</mosaic_0001>

<llo_original>
// kernel: tpu_custom_call.1
$region0: #{tpu_custom_call.1}
  #allocation0 [shape = 'u32[]', space=smem, size = 0x4, offset = 0x4, fixed_abs, tag = 'smem constant byte address 0x4 - core index']
  #allocation1 [shape = 'u32[144,128]{1,0:T(1,128)}', space=vmem, size = 0x12000, scoped, tag = 'internal scratch']
  %s0 = inlined_call_operand.hbm [shape: f32[1,2048], index: 0, kind: input, shape index: {}]
  %s1 = inlined_call_operand.hbm [shape: f32[1,2048], index: 1, kind: output, shape index: {}]
  %s2 = sld [smem:[#allocation0]]
  $region18: #{tpu_custom_call.1} parent=0
    _
  %s4 = ssub.s32 1, %s2
  %s5 = scalar_select 0, %s4, %s2
  $region1: #{tpu_custom_call.1} parent=0
    #allocation2 [shape = 'u8[8192]{0}', space=vmem, size = 0x2000, scoped, tag = 'input window, operand 0, single buffered']
    #allocation3 [shape = 's32[1]{0}', space=sflag, size = 0x4, scoped, tag = 'scoped memory for tpu_custom_call.1']
    #allocation4 [shape = 's32[1]{0}', space=sflag, size = 0x4, scoped, tag = 'scoped memory for tpu_custom_call.1']
    #allocation5 [shape = 'u8[8192]{0}', space=vmem, size = 0x2000, scoped, tag = 'output window, operand 0, single buffered']
    %6 = vsyncpa [#allocation3], 0
    %7 = vsyncpa [#allocation4], 0
    // Predicated region
    $region2: #{tpu_custom_call.1} parent=1 // pred_check
      _
    $region3: #{tpu_custom_call.1} parent=1 // pred_check_branch
      %9 = sbr.rel (0) target = $region5
    $region4: #{tpu_custom_call.1} parent=1 // pred_region
      %s11 = ssub.s32 256, 256
      %12 = vsyncadd [#allocation3], %s11
      %s14 = sshll.u32 [#allocation2], 4
      %s15 = int_to_ptr.vmem [resolvable:$true] %s14
      %17 = dma.hbm_to_vmem [thread:$0]  %s0, 256, %s15, [#allocation3]
    $region5: #{tpu_custom_call.1} parent=1 // pred_fallthru
      _
    // Predicated region
    $region6: #{tpu_custom_call.1} parent=1 // pred_check
      _
    $region7: #{tpu_custom_call.1} parent=1 // pred_check_branch
      %19 = sbr.rel (0) target = $region9
    $region8: #{tpu_custom_call.1} parent=1 // pred_region
      %20 = dma.done [#allocation3], 256
    $region9: #{tpu_custom_call.1} parent=1 // pred_fallthru
      _
    %v21 = vld [vmem:[#allocation2] sm:$0xff]
    %v22 = vld [vmem:[#allocation2 + $0x8] sm:$0xff]
    %23 = vst [vmem:[#allocation5] sm:$0xff] %v21
    %24 = vst [vmem:[#allocation5 + $0x8] sm:$0xff] %v22
    // Predicated region
    $region10: #{tpu_custom_call.1} parent=1 // pred_check
      _
    $region11: #{tpu_custom_call.1} parent=1 // pred_check_branch
      %26 = sbr.rel (0) target = $region13
    $region12: #{tpu_custom_call.1} parent=1 // pred_region
      %s28 = ssub.s32 256, 256
      %29 = vsyncadd [#allocation4], %s28
      %s31 = sshll.u32 [#allocation5], 4
      %s32 = int_to_ptr.vmem [resolvable:$true] %s31
      %34 = dma.vmem_to_hbm [thread:$0]  %s32, 256, %s1, [#allocation4]
    $region13: #{tpu_custom_call.1} parent=1 // pred_fallthru
      _
    // Predicated region
    $region14: #{tpu_custom_call.1} parent=1 // pred_check
      _
    $region15: #{tpu_custom_call.1} parent=1 // pred_check_branch
      %36 = sbr.rel (0) target = $region17
    $region16: #{tpu_custom_call.1} parent=1 // pred_region
      %37 = dma.done [#allocation4], 256
    $region17: #{tpu_custom_call.1} parent=1 // pred_fallthru
      _
    %38 = vsyncpa [#allocation3], 1
    %39 = vsyncpa [#allocation4], 1

</llo_original>
